<compile_context>
chip_gen: v7x
topology: tpu7x:2x2x1
jax: 0.10.0
libtpu: 0.0.40
codegen_flags: <defaults>
</compile_context>

<pallas_src>
import functools

import jax
import jax.numpy as jnp
from jax.experimental import pallas as pl
from jax.experimental.pallas import tpu as pltpu


def _msr_kernel(f_ref, out_ref, *, total_s, tile_s, needs_mask):
    # f_ref:   (T, C, tile_s) block of the features, input dtype.
    # out_ref: (1, 1, tile_s) per-tile partial sum of channel L2 norms (f32).
    T = f_ref.shape[0]

    # Rolling 2-frame window: each frame is read from VMEM exactly once and
    # cast to f32 per (C, tile_s) slice (low vreg pressure; HBM traffic stays
    # in the narrow input dtype).
    f_prev2 = f_ref[0].astype(jnp.float32)  # (C, tile_s)
    f_prev1 = f_ref[1].astype(jnp.float32)

    partial = jnp.zeros((1, tile_s), jnp.float32)
    for t in range(T - 2):  # static trip count -> unrolled at trace time
        f_cur = f_ref[t + 2].astype(jnp.float32)
        a = f_cur - 2.0 * f_prev1 + f_prev2              # (C, tile_s)  VPU
        sq = jnp.sum(a * a, axis=0, keepdims=True)       # (1, tile_s)  channel reduce (XLU)
        partial = partial + jnp.sqrt(sq)                 # EUP sqrt, lane-dense
        f_prev2 = f_prev1
        f_prev1 = f_cur

    if needs_mask:
        # Last tile may extend past S: zero out the out-of-range lanes so the
        # undefined block padding contributes nothing to the sum.
        lane = jax.lax.broadcasted_iota(jnp.int32, (1, tile_s), 1)
        global_lane = pl.program_id(0) * tile_s + lane
        partial = jnp.where(global_lane < total_s, partial, 0.0)

    out_ref[0] = partial


def motion_smoothness_regularization(features: jax.Array, weight: float = 0.05) -> jax.Array:
    """features: (T, C, H, W) float array. Returns scalar loss (f32)."""
    T, C, H, W = features.shape
    assert T >= 3, "need at least 3 frames for second-order differences"
    S = H * W

    x = features.reshape(T, C, S)
    itemsize = jnp.dtype(features.dtype).itemsize

    # Largest lane-dense spatial tile whose double-buffered (T, C, tile_s)
    # input block stays well under scoped VMEM on every generation
    # (v5e 16 MiB default, v6e/v7x 32 MiB), with headroom for outputs.
    vmem_budget = 8 * 1024 * 1024
    max_lanes = max(128, (vmem_budget // (2 * T * C * itemsize)) // 128 * 128)

    if pl.cdiv(S, 128) * 128 <= max_lanes:
        # Whole spatial extent fits in one block: use the full array dim for
        # the last block axis (allowed regardless of 128-divisibility), no mask.
        tile_s = S
        num_tiles = 1
        needs_mask = False
    else:
        tile_s = max_lanes
        num_tiles = pl.cdiv(S, tile_s)
        needs_mask = (S % tile_s) != 0

    kernel = functools.partial(
        _msr_kernel, total_s=S, tile_s=tile_s, needs_mask=needs_mask
    )

    partials = pl.pallas_call(
        kernel,
        out_shape=jax.ShapeDtypeStruct((num_tiles, 1, tile_s), jnp.float32),
        grid_spec=pltpu.PrefetchScalarGridSpec(
            num_scalar_prefetch=0,
            grid=(num_tiles,),
            in_specs=[pl.BlockSpec((T, C, tile_s), lambda s: (0, 0, s))],
            out_specs=pl.BlockSpec((1, 1, tile_s), lambda s: (s, 0, 0)),
        ),
        compiler_params=pltpu.CompilerParams(
            dimension_semantics=("parallel",),   # independent spatial tiles -> megacore
            vmem_limit_bytes=32 * 1024 * 1024,   # safe on v5e/v6e/v7x, gives headroom
        ),
    )(x)

    count = (T - 2) * H * W  # number of elements in torch.norm(acc, dim=1)
    return (weight * jnp.sum(partials) / count).astype(jnp.float32)


def _reference(features, weight=0.05):
    f = features.astype(jnp.float32)
    acc = f[2:] - 2.0 * f[1:-1] + f[:-2]
    norm = jnp.sqrt(jnp.sum(acc * acc, axis=1))
    return weight * jnp.mean(norm)


if __name__ == "__main__":
    key = jax.random.PRNGKey(0)
    T, C, H, W = 8, 4, 16, 16
    features = jax.random.normal(key, (T, C, H, W), dtype=jnp.float32)

    out = jax.block_until_ready(motion_smoothness_regularization(features, weight=0.05))
    ref = jax.block_until_ready(_reference(features, weight=0.05))

    assert jnp.allclose(out, ref, rtol=1e-5, atol=1e-6), (out, ref)
    print("KERNEL_OK")
</pallas_src>

<mosaic_0001>
module attributes {stable_mosaic.version = 11 : i64} {
  func.func @_msr_kernel(%arg0: i32, %arg1: memref<8x4x256xf32, #tpu.memory_space<vmem>>, %arg2: memref<1x1x256xf32, #tpu.memory_space<vmem>>) attributes {dimension_semantics = [#tpu.dimension_semantics<parallel>], iteration_bounds = array<i64: 1>, scalar_prefetch = 0 : i64, scratch_operands = 0 : i64, tpu.core_type = #tpu.core_type<tc>, window_params = [{transform_indices = @transform_0, window_bounds = array<i64: 8, 4, 256>}, {transform_indices = @transform_1, window_bounds = array<i64: 1, 1, 256>}]} {
    %c0 = arith.constant 0 : index
    %c0_0 = arith.constant 0 : index
    %c0_1 = arith.constant 0 : index
    %0 = vector.load %arg1[%c0, %c0_0, %c0_1] : memref<8x4x256xf32, #tpu.memory_space<vmem>>, vector<1x4x256xf32>
    %1 = vector.shape_cast %0 : vector<1x4x256xf32> to vector<4x256xf32>
    %c1 = arith.constant 1 : index
    %c0_2 = arith.constant 0 : index
    %c0_3 = arith.constant 0 : index
    %2 = vector.load %arg1[%c1, %c0_2, %c0_3] : memref<8x4x256xf32, #tpu.memory_space<vmem>>, vector<1x4x256xf32>
    %3 = vector.shape_cast %2 : vector<1x4x256xf32> to vector<4x256xf32>
    %cst = arith.constant 0.000000e+00 : f32
    %4 = vector.broadcast %cst : f32 to vector<1x256xf32>
    %c2 = arith.constant 2 : index
    %c0_4 = arith.constant 0 : index
    %c0_5 = arith.constant 0 : index
    %5 = vector.load %arg1[%c2, %c0_4, %c0_5] : memref<8x4x256xf32, #tpu.memory_space<vmem>>, vector<1x4x256xf32>
    %6 = vector.shape_cast %5 : vector<1x4x256xf32> to vector<4x256xf32>
    %cst_6 = arith.constant 2.000000e+00 : f32
    %7 = vector.broadcast %cst_6 : f32 to vector<4x256xf32>
    %8 = arith.mulf %7, %3 : vector<4x256xf32>
    %9 = arith.subf %6, %8 : vector<4x256xf32>
    %10 = arith.addf %9, %1 : vector<4x256xf32>
    %11 = arith.mulf %10, %10 : vector<4x256xf32>
    %cst_7 = arith.constant dense<0.000000e+00> : vector<256xf32>
    %12 = vector.multi_reduction <add>, %11, %cst_7 [0] : vector<4x256xf32> to vector<256xf32>
    %13 = vector.shape_cast %12 : vector<256xf32> to vector<1x256xf32>
    %14 = math.sqrt %13 : vector<1x256xf32>
    %15 = arith.addf %4, %14 : vector<1x256xf32>
    %c3 = arith.constant 3 : index
    %c0_8 = arith.constant 0 : index
    %c0_9 = arith.constant 0 : index
    %16 = vector.load %arg1[%c3, %c0_8, %c0_9] : memref<8x4x256xf32, #tpu.memory_space<vmem>>, vector<1x4x256xf32>
    %17 = vector.shape_cast %16 : vector<1x4x256xf32> to vector<4x256xf32>
    %cst_10 = arith.constant 2.000000e+00 : f32
    %18 = vector.broadcast %cst_10 : f32 to vector<4x256xf32>
    %19 = arith.mulf %18, %6 : vector<4x256xf32>
    %20 = arith.subf %17, %19 : vector<4x256xf32>
    %21 = arith.addf %20, %3 : vector<4x256xf32>
    %22 = arith.mulf %21, %21 : vector<4x256xf32>
    %cst_11 = arith.constant dense<0.000000e+00> : vector<256xf32>
    %23 = vector.multi_reduction <add>, %22, %cst_11 [0] : vector<4x256xf32> to vector<256xf32>
    %24 = vector.shape_cast %23 : vector<256xf32> to vector<1x256xf32>
    %25 = math.sqrt %24 : vector<1x256xf32>
    %26 = arith.addf %15, %25 : vector<1x256xf32>
    %c4 = arith.constant 4 : index
    %c0_12 = arith.constant 0 : index
    %c0_13 = arith.constant 0 : index
    %27 = vector.load %arg1[%c4, %c0_12, %c0_13] : memref<8x4x256xf32, #tpu.memory_space<vmem>>, vector<1x4x256xf32>
    %28 = vector.shape_cast %27 : vector<1x4x256xf32> to vector<4x256xf32>
    %cst_14 = arith.constant 2.000000e+00 : f32
    %29 = vector.broadcast %cst_14 : f32 to vector<4x256xf32>
    %30 = arith.mulf %29, %17 : vector<4x256xf32>
    %31 = arith.subf %28, %30 : vector<4x256xf32>
    %32 = arith.addf %31, %6 : vector<4x256xf32>
    %33 = arith.mulf %32, %32 : vector<4x256xf32>
    %cst_15 = arith.constant dense<0.000000e+00> : vector<256xf32>
    %34 = vector.multi_reduction <add>, %33, %cst_15 [0] : vector<4x256xf32> to vector<256xf32>
    %35 = vector.shape_cast %34 : vector<256xf32> to vector<1x256xf32>
    %36 = math.sqrt %35 : vector<1x256xf32>
    %37 = arith.addf %26, %36 : vector<1x256xf32>
    %c5 = arith.constant 5 : index
    %c0_16 = arith.constant 0 : index
    %c0_17 = arith.constant 0 : index
    %38 = vector.load %arg1[%c5, %c0_16, %c0_17] : memref<8x4x256xf32, #tpu.memory_space<vmem>>, vector<1x4x256xf32>
    %39 = vector.shape_cast %38 : vector<1x4x256xf32> to vector<4x256xf32>
    %cst_18 = arith.constant 2.000000e+00 : f32
    %40 = vector.broadcast %cst_18 : f32 to vector<4x256xf32>
    %41 = arith.mulf %40, %28 : vector<4x256xf32>
    %42 = arith.subf %39, %41 : vector<4x256xf32>
    %43 = arith.addf %42, %17 : vector<4x256xf32>
    %44 = arith.mulf %43, %43 : vector<4x256xf32>
    %cst_19 = arith.constant dense<0.000000e+00> : vector<256xf32>
    %45 = vector.multi_reduction <add>, %44, %cst_19 [0] : vector<4x256xf32> to vector<256xf32>
    %46 = vector.shape_cast %45 : vector<256xf32> to vector<1x256xf32>
    %47 = math.sqrt %46 : vector<1x256xf32>
    %48 = arith.addf %37, %47 : vector<1x256xf32>
    %c6 = arith.constant 6 : index
    %c0_20 = arith.constant 0 : index
    %c0_21 = arith.constant 0 : index
    %49 = vector.load %arg1[%c6, %c0_20, %c0_21] : memref<8x4x256xf32, #tpu.memory_space<vmem>>, vector<1x4x256xf32>
    %50 = vector.shape_cast %49 : vector<1x4x256xf32> to vector<4x256xf32>
    %cst_22 = arith.constant 2.000000e+00 : f32
    %51 = vector.broadcast %cst_22 : f32 to vector<4x256xf32>
    %52 = arith.mulf %51, %39 : vector<4x256xf32>
    %53 = arith.subf %50, %52 : vector<4x256xf32>
    %54 = arith.addf %53, %28 : vector<4x256xf32>
    %55 = arith.mulf %54, %54 : vector<4x256xf32>
    %cst_23 = arith.constant dense<0.000000e+00> : vector<256xf32>
    %56 = vector.multi_reduction <add>, %55, %cst_23 [0] : vector<4x256xf32> to vector<256xf32>
    %57 = vector.shape_cast %56 : vector<256xf32> to vector<1x256xf32>
    %58 = math.sqrt %57 : vector<1x256xf32>
    %59 = arith.addf %48, %58 : vector<1x256xf32>
    %c7 = arith.constant 7 : index
    %c0_24 = arith.constant 0 : index
    %c0_25 = arith.constant 0 : index
    %60 = vector.load %arg1[%c7, %c0_24, %c0_25] : memref<8x4x256xf32, #tpu.memory_space<vmem>>, vector<1x4x256xf32>
    %61 = vector.shape_cast %60 : vector<1x4x256xf32> to vector<4x256xf32>
    %cst_26 = arith.constant 2.000000e+00 : f32
    %62 = vector.broadcast %cst_26 : f32 to vector<4x256xf32>
    %63 = arith.mulf %62, %50 : vector<4x256xf32>
    %64 = arith.subf %61, %63 : vector<4x256xf32>
    %65 = arith.addf %64, %39 : vector<4x256xf32>
    %66 = arith.mulf %65, %65 : vector<4x256xf32>
    %cst_27 = arith.constant dense<0.000000e+00> : vector<256xf32>
    %67 = vector.multi_reduction <add>, %66, %cst_27 [0] : vector<4x256xf32> to vector<256xf32>
    %68 = vector.shape_cast %67 : vector<256xf32> to vector<1x256xf32>
    %69 = math.sqrt %68 : vector<1x256xf32>
    %70 = arith.addf %59, %69 : vector<1x256xf32>
    %c0_28 = arith.constant 0 : index
    %c0_29 = arith.constant 0 : index
    %c0_30 = arith.constant 0 : index
    %71 = vector.load %arg2[%c0_28, %c0_29, %c0_30] : memref<1x1x256xf32, #tpu.memory_space<vmem>>, vector<1x1x256xf32>
    %72 = vector.shape_cast %71 : vector<1x1x256xf32> to vector<1x256xf32>
    %73 = vector.shape_cast %70 : vector<1x256xf32> to vector<1x1x256xf32>
    tpu.vector_store %arg2[%c0_28, %c0_29, %c0_30], %73 {strides = array<i32>} : memref<1x1x256xf32, #tpu.memory_space<vmem>>, vector<1x1x256xf32>,
    return
  }
  func.func @transform_0(%arg0: i32) -> (i32, i32, i32) {
    %c0_i32 = arith.constant 0 : i32
    %c0_i32_0 = arith.constant 0 : i32
    %c0_i32_1 = arith.constant 0 : i32
    return %c0_i32, %c0_i32_0, %arg0 : i32, i32, i32
  }
  func.func @transform_1(%arg0: i32) -> (i32, i32, i32) {
    %c0_i32 = arith.constant 0 : i32
    %c0_i32_0 = arith.constant 0 : i32
    %c0_i32_1 = arith.constant 0 : i32
    return %arg0, %c0_i32, %c0_i32_0 : i32, i32, i32
  }
}

</mosaic_0001>

<llo_original>
// kernel: tpu_custom_call.1
$region0: #{tpu_custom_call.1}
  #allocation0 [shape = 'u32[]', space=smem, size = 0x4, offset = 0x4, fixed_abs, tag = 'smem constant byte address 0x4 - core index']
  #allocation1 [shape = 'u32[144,128]{1,0:T(1,128)}', space=vmem, size = 0x12000, scoped, tag = 'internal scratch']
  %s0 = inlined_call_operand.hbm [shape: f32[8,4,256], index: 0, kind: input, shape index: {}]
  %s1 = inlined_call_operand.hbm [shape: f32[1,1,256], index: 1, kind: output, shape index: {}]
  %s2 = sld [smem:[#allocation0]]
  $region18: #{tpu_custom_call.1} parent=0
    _
  %s4 = ssub.s32 1, %s2
  %s5 = scalar_select 0, %s4, %s2
  $region1: #{tpu_custom_call.1} parent=0
    #allocation2 [shape = 'u8[32768]{0}', space=vmem, size = 0x8000, scoped, tag = 'input window, operand 0, single buffered']
    #allocation3 [shape = 's32[1]{0}', space=sflag, size = 0x4, scoped, tag = 'scoped memory for tpu_custom_call.1']
    #allocation4 [shape = 's32[1]{0}', space=sflag, size = 0x4, scoped, tag = 'scoped memory for tpu_custom_call.1']
    #allocation5 [shape = 'u8[1024]{0}', space=vmem, size = 0x400, scoped, tag = 'output window, operand 0, single buffered']
    %6 = vsyncpa [#allocation3], 0
    %7 = vsyncpa [#allocation4], 0
    // Predicated region
    $region2: #{tpu_custom_call.1} parent=1 // pred_check
      _
    $region3: #{tpu_custom_call.1} parent=1 // pred_check_branch
      %9 = sbr.rel (0) target = $region5
    $region4: #{tpu_custom_call.1} parent=1 // pred_region
      %s11 = ssub.s32 1024, 1024
      %12 = vsyncadd [#allocation3], %s11
      %s13 = sshll.u32 [#allocation2], 4
      %s14 = int_to_ptr.vmem [resolvable:$true] %s13
      %19 = dma.hbm_to_vmem [thread:$0]  %s0, 1024, %s14, [#allocation3], 128, 128, 8
    $region5: #{tpu_custom_call.1} parent=1 // pred_fallthru
      _
    // Predicated region
    $region6: #{tpu_custom_call.1} parent=1 // pred_check
      _
    $region7: #{tpu_custom_call.1} parent=1 // pred_check_branch
      %21 = sbr.rel (0) target = $region9
    $region8: #{tpu_custom_call.1} parent=1 // pred_region
      %22 = dma.done [#allocation3], 1024
    $region9: #{tpu_custom_call.1} parent=1 // pred_fallthru
      _
    %v23 = vld [vmem:[#allocation2] sm:$0xff]
    %s24 = scalar_lea.vmem [#allocation2], 8
    %v25 = vld [vmem:[%s24] sm:$0xff]
    %s26 = scalar_lea.vmem [#allocation2], 16
    %v27 = vld [vmem:[%s26] sm:$0xff]
    %v28 = vmul.f32 %v25, 2.0
    %v29 = vsub.f32 %v27, %v28
    %v30 = vadd.f32 %v29, %v23
    %v31 = vmul.f32 %v30, %v30
    %v33 = vcombine.high %v31, %v31
    %vm35 = vcmask 1043456
    %v36 = vsel %vm35, %v31, 0.0
    %v37 = vrot.slane %v36, 4
    %v38 = vadd.f32 %v36, %v37
    %v39 = vrot.slane %v38, 2
    %v40 = vadd.f32 %v38, %v39
    %v41 = vrot.slane %v40, 1
    %v42 = vadd.f32 %v40, %v41
    %v43 = vsel %vm35, %v33, 0.0
    %v44 = vrot.slane %v43, 4
    %v45 = vadd.f32 %v43, %v44
    %v46 = vrot.slane %v45, 2
    %v47 = vadd.f32 %v45, %v46
    %v48 = vrot.slane %v47, 1
    %v49 = vadd.f32 %v47, %v48
    %v50 = vrsqrt.pop %v42
    %v51 = vmul.f32 %v42, %v50
    %vm52 = vcmp.eq.f32.partialorder %v42, inf
    %v53 = vsel %vm52, %v42, %v51
    %vm54 = vcmp.eq.f32.partialorder %v42, 0.0
    %v55 = vand.u32 %v42, 2147483648
    %v56 = vsel %vm54, %v55, %v53
    %v57 = vrsqrt.pop %v49
    %v58 = vmul.f32 %v49, %v57
    %vm59 = vcmp.eq.f32.partialorder %v49, inf
    %v60 = vsel %vm59, %v49, %v58
    %vm61 = vcmp.eq.f32.partialorder %v49, 0.0
    %v62 = vand.u32 %v49, 2147483648
    %v63 = vsel %vm61, %v62, %v60
    %v64 = vadd.f32 %v56, 0.0
    %v65 = vadd.f32 %v63, 0.0
    %s66 = scalar_lea.vmem [#allocation2], 24
    %v67 = vld [vmem:[%s66] sm:$0xff]
    %v68 = vmul.f32 %v27, 2.0
    %v69 = vsub.f32 %v67, %v68
    %v70 = vadd.f32 %v69, %v25
    %v71 = vmul.f32 %v70, %v70
    %v73 = vcombine.high %v71, %v71
    %v75 = vsel %vm35, %v71, 0.0
    %v76 = vrot.slane %v75, 4
    %v77 = vadd.f32 %v75, %v76
    %v78 = vrot.slane %v77, 2
    %v79 = vadd.f32 %v77, %v78
    %v80 = vrot.slane %v79, 1
    %v81 = vadd.f32 %v79, %v80
    %v82 = vsel %vm35, %v73, 0.0
    %v83 = vrot.slane %v82, 4
    %v84 = vadd.f32 %v82, %v83
    %v85 = vrot.slane %v84, 2
    %v86 = vadd.f32 %v84, %v85
    %v87 = vrot.slane %v86, 1
    %v88 = vadd.f32 %v86, %v87
    %v89 = vrsqrt.pop %v81
    %v90 = vmul.f32 %v81, %v89
    %vm91 = vcmp.eq.f32.partialorder %v81, inf
    %v92 = vsel %vm91, %v81, %v90
    %vm93 = vcmp.eq.f32.partialorder %v81, 0.0
    %v94 = vand.u32 %v81, 2147483648
    %v95 = vsel %vm93, %v94, %v92
    %v96 = vrsqrt.pop %v88
    %v97 = vmul.f32 %v88, %v96
    %vm98 = vcmp.eq.f32.partialorder %v88, inf
    %v99 = vsel %vm98, %v88, %v97
    %vm100 = vcmp.eq.f32.partialorder %v88, 0.0
    %v101 = vand.u32 %v88, 2147483648
    %v102 = vsel %vm100, %v101, %v99
    %v103 = vadd.f32 %v64, %v95
    %v104 = vadd.f32 %v65, %v102
    %s105 = scalar_lea.vmem [#allocation2], 32
    %v106 = vld [vmem:[%s105] sm:$0xff]
    %v107 = vmul.f32 %v67, 2.0
    %v108 = vsub.f32 %v106, %v107
    %v109 = vadd.f32 %v108, %v27
    %v110 = vmul.f32 %v109, %v109
    %v112 = vcombine.high %v110, %v110
    %v114 = vsel %vm35, %v110, 0.0
    %v115 = vrot.slane %v114, 4
    %v116 = vadd.f32 %v114, %v115
    %v117 = vrot.slane %v116, 2
    %v118 = vadd.f32 %v116, %v117
    %v119 = vrot.slane %v118, 1
    %v120 = vadd.f32 %v118, %v119
    %v121 = vsel %vm35, %v112, 0.0
    %v122 = vrot.slane %v121, 4
    %v123 = vadd.f32 %v121, %v122
    %v124 = vrot.slane %v123, 2
    %v125 = vadd.f32 %v123, %v124
    %v126 = vrot.slane %v125, 1
    %v127 = vadd.f32 %v125, %v126
    %v128 = vrsqrt.pop %v120
    %v129 = vmul.f32 %v120, %v128
    %vm130 = vcmp.eq.f32.partialorder %v120, inf
    %v131 = vsel %vm130, %v120, %v129
    %vm132 = vcmp.eq.f32.partialorder %v120, 0.0
    %v133 = vand.u32 %v120, 2147483648
    %v134 = vsel %vm132, %v133, %v131
    %v135 = vrsqrt.pop %v127
    %v136 = vmul.f32 %v127, %v135
    %vm137 = vcmp.eq.f32.partialorder %v127, inf
    %v138 = vsel %vm137, %v127, %v136
    %vm139 = vcmp.eq.f32.partialorder %v127, 0.0
    %v140 = vand.u32 %v127, 2147483648
    %v141 = vsel %vm139, %v140, %v138
    %v142 = vadd.f32 %v103, %v134
    %v143 = vadd.f32 %v104, %v141
    %s144 = scalar_lea.vmem [#allocation2], 40
    %v145 = vld [vmem:[%s144] sm:$0xff]
    %v146 = vmul.f32 %v106, 2.0
    %v147 = vsub.f32 %v145, %v146
    %v148 = vadd.f32 %v147, %v67
    %v149 = vmul.f32 %v148, %v148
    %v151 = vcombine.high %v149, %v149
    %v153 = vsel %vm35, %v149, 0.0
    %v154 = vrot.slane %v153, 4
    %v155 = vadd.f32 %v153, %v154
    %v156 = vrot.slane %v155, 2
    %v157 = vadd.f32 %v155, %v156
    %v158 = vrot.slane %v157, 1
    %v159 = vadd.f32 %v157, %v158
    %v160 = vsel %vm35, %v151, 0.0
    %v161 = vrot.slane %v160, 4
    %v162 = vadd.f32 %v160, %v161
    %v163 = vrot.slane %v162, 2
    %v164 = vadd.f32 %v162, %v163
    %v165 = vrot.slane %v164, 1
    %v166 = vadd.f32 %v164, %v165
    %v167 = vrsqrt.pop %v159
    %v168 = vmul.f32 %v159, %v167
    %vm169 = vcmp.eq.f32.partialorder %v159, inf
    %v170 = vsel %vm169, %v159, %v168
    %vm171 = vcmp.eq.f32.partialorder %v159, 0.0
    %v172 = vand.u32 %v159, 2147483648
    %v173 = vsel %vm171, %v172, %v170
    %v174 = vrsqrt.pop %v166
    %v175 = vmul.f32 %v166, %v174
    %vm176 = vcmp.eq.f32.partialorder %v166, inf
    %v177 = vsel %vm176, %v166, %v175
    %vm178 = vcmp.eq.f32.partialorder %v166, 0.0
    %v179 = vand.u32 %v166, 2147483648
    %v180 = vsel %vm178, %v179, %v177
    %v181 = vadd.f32 %v142, %v173
    %v182 = vadd.f32 %v143, %v180
    %s183 = scalar_lea.vmem [#allocation2], 48
    %v184 = vld [vmem:[%s183] sm:$0xff]
    %v185 = vmul.f32 %v145, 2.0
    %v186 = vsub.f32 %v184, %v185
    %v187 = vadd.f32 %v186, %v106
    %v188 = vmul.f32 %v187, %v187
    %v190 = vcombine.high %v188, %v188
    %v192 = vsel %vm35, %v188, 0.0
    %v193 = vrot.slane %v192, 4
    %v194 = vadd.f32 %v192, %v193
    %v195 = vrot.slane %v194, 2
    %v196 = vadd.f32 %v194, %v195
    %v197 = vrot.slane %v196, 1
    %v198 = vadd.f32 %v196, %v197
    %v199 = vsel %vm35, %v190, 0.0
    %v200 = vrot.slane %v199, 4
    %v201 = vadd.f32 %v199, %v200
    %v202 = vrot.slane %v201, 2
    %v203 = vadd.f32 %v201, %v202
    %v204 = vrot.slane %v203, 1
    %v205 = vadd.f32 %v203, %v204
    %v206 = vrsqrt.pop %v198
    %v207 = vmul.f32 %v198, %v206
    %vm208 = vcmp.eq.f32.partialorder %v198, inf
    %v209 = vsel %vm208, %v198, %v207
    %vm210 = vcmp.eq.f32.partialorder %v198, 0.0
    %v211 = vand.u32 %v198, 2147483648
    %v212 = vsel %vm210, %v211, %v209
    %v213 = vrsqrt.pop %v205
    %v214 = vmul.f32 %v205, %v213
    %vm215 = vcmp.eq.f32.partialorder %v205, inf
    %v216 = vsel %vm215, %v205, %v214
    %vm217 = vcmp.eq.f32.partialorder %v205, 0.0
    %v218 = vand.u32 %v205, 2147483648
    %v219 = vsel %vm217, %v218, %v216
    %v220 = vadd.f32 %v181, %v212
    %v221 = vadd.f32 %v182, %v219
    %s222 = scalar_lea.vmem [#allocation2], 56
    %v223 = vld [vmem:[%s222] sm:$0xff]
    %v224 = vmul.f32 %v184, 2.0
    %v225 = vsub.f32 %v223, %v224
    %v226 = vadd.f32 %v225, %v145
    %v227 = vmul.f32 %v226, %v226
    %v229 = vcombine.high %v227, %v227
    %v231 = vsel %vm35, %v227, 0.0
    %v232 = vrot.slane %v231, 4
    %v233 = vadd.f32 %v231, %v232
    %v234 = vrot.slane %v233, 2
    %v235 = vadd.f32 %v233, %v234
    %v236 = vrot.slane %v235, 1
    %v237 = vadd.f32 %v235, %v236
    %v238 = vsel %vm35, %v229, 0.0
    %v239 = vrot.slane %v238, 4
    %v240 = vadd.f32 %v238, %v239
    %v241 = vrot.slane %v240, 2
    %v242 = vadd.f32 %v240, %v241
    %v243 = vrot.slane %v242, 1
    %v244 = vadd.f32 %v242, %v243
    %v245 = vrsqrt.pop %v237
    %v246 = vmul.f32 %v237, %v245
    %vm247 = vcmp.eq.f32.partialorder %v237, inf
    %v248 = vsel %vm247, %v237, %v246
    %vm249 = vcmp.eq.f32.partialorder %v237, 0.0
    %v250 = vand.u32 %v237, 2147483648
    %v251 = vsel %vm249, %v250, %v248
    %v252 = vrsqrt.pop %v244
    %v253 = vmul.f32 %v244, %v252
    %vm254 = vcmp.eq.f32.partialorder %v244, inf
    %v255 = vsel %vm254, %v244, %v253
    %vm256 = vcmp.eq.f32.partialorder %v244, 0.0
    %v257 = vand.u32 %v244, 2147483648
    %v258 = vsel %vm256, %v257, %v255
    %v259 = vadd.f32 %v220, %v251
    %v260 = vadd.f32 %v221, %v258
    %v263 = vcombine.low %v259, %v260
    %v265 = vunpack.c.l.s4 1966171168
    %v266 = vunpack.c.0.s8 %v265
    %v267 = vlaneseq
    %v268 = vshrl.u32 %v267, 7
    %v269 = vsub.s32 %v266, %v268
    %v270 = vrot.slane %v263, %v269
    %v272 = vunpack.c.l.s4 1966171168
    %v273 = vunpack.c.0.s8 %v272
    %v274 = vlaneseq
    %v275 = vshrl.u32 %v274, 7
    %v276 = vsub.s32 %v273, %v275
    %v277 = vrot.slane %v270, %v276
    %v279 = vlaneseq
    %vm280 = vcmp.ge.s32.totalorder %v279, 0
    %vm281 = vcmp.lt.s32.totalorder %v279, 256
    %vm282 = vmand %vm280, %vm281
    %283 = vst.msk [vmem:[#allocation5] sm:$0x3] %vm282, %v277
    // Predicated region
    $region10: #{tpu_custom_call.1} parent=1 // pred_check
      _
    $region11: #{tpu_custom_call.1} parent=1 // pred_check_branch
      %285 = sbr.rel (0) target = $region13
    $region12: #{tpu_custom_call.1} parent=1 // pred_region
      %s287 = ssub.s32 32, 32
      %288 = vsyncadd [#allocation4], %s287
      %s290 = sshll.u32 [#allocation5], 4
      %s291 = int_to_ptr.vmem [resolvable:$true] %s290
      %293 = dma.vmem_to_hbm [thread:$0]  %s291, 32, %s1, [#allocation4]
    $region13: #{tpu_custom_call.1} parent=1 // pred_fallthru
      _
    // Predicated region
    $region14: #{tpu_custom_call.1} parent=1 // pred_check
      _
    $region15: #{tpu_custom_call.1} parent=1 // pred_check_branch
      %295 = sbr.rel (0) target = $region17
    $region16: #{tpu_custom_call.1} parent=1 // pred_region
      %296 = dma.done [#allocation4], 32
    $region17: #{tpu_custom_call.1} parent=1 // pred_fallthru
      _
    %297 = vsyncpa [#allocation3], 1
    %298 = vsyncpa [#allocation4], 1

</llo_original>
